<compile_context>
chip_gen: v7x
topology: tpu7x:2x2x1
jax: 0.10.0
libtpu: 0.0.40
codegen_flags: <defaults>
</compile_context>

<pallas_src>
import numpy as np
import jax
import jax.numpy as jnp
from jax import lax
from jax.experimental import pallas as pl
from jax.experimental.pallas import tpu as pltpu

EMBED = 32      # embed_size
HIDDEN = 32     # nHidden
NCLASSES = 8    # nClasses
SEQ = 8         # number of timesteps T (batch folded to 1, as in the module)


def _bilstm_classifier_kernel(x_ref, wih_ref, whh_ref, b_ref, wout_ref, bout_ref, out_ref):
    H = HIDDEN
    T = x_ref.shape[0]

    x = x_ref[...]                                                          # (T, E)

    # Fused input projection for BOTH directions, all timesteps, one MXU pass:
    # (T, E) @ (E, 8H) -> (T, 8H); columns = [i_f,i_b,f_f,f_b,g_f,g_b,o_f,o_b].
    xp = jnp.dot(x, wih_ref[...], preferred_element_type=jnp.float32) + b_ref[...]

    whh = whh_ref[...]                                                      # (2H, 8H) block-diag

    # Lane mask selecting forward-direction columns (each gate block is [H fwd | H bwd]).
    lane = lax.broadcasted_iota(jnp.int32, (1, 8 * H), 1)
    is_fwd = (lane & (2 * H - 1)) < H                                       # 2H is a power of two

    h = jnp.zeros((1, 2 * H), jnp.float32)                                  # [h_fwd | h_bwd]
    c = jnp.zeros((1, 2 * H), jnp.float32)

    # Fully unrolled fused recurrence: step s advances the forward direction on x[s]
    # and the backward direction on x[T-1-s]; one (1,2H)@(2H,8H) matmul per step.
    for s in range(T):
        gx = jnp.where(is_fwd, xp[s:s + 1, :], xp[T - 1 - s:T - s, :])      # (1, 8H)
        g = gx + jnp.dot(h, whh, preferred_element_type=jnp.float32)        # (1, 8H)
        i = jax.nn.sigmoid(g[:, 0 * H:2 * H])
        f = jax.nn.sigmoid(g[:, 2 * H:4 * H])
        gg = jnp.tanh(g[:, 4 * H:6 * H])
        o = jax.nn.sigmoid(g[:, 6 * H:8 * H])
        c = f * c + i * gg
        h = o * jnp.tanh(c)

    # After the last step h == [h_fwd(final) | h_bwd(final)] == hidden.view(1, 2H).
    out_ref[...] = (jnp.dot(h, wout_ref[...], preferred_element_type=jnp.float32)
                    + bout_ref[...])                                        # (1, nClasses)


def bilstm_classifier(x, kernel_params):
    """x: (T, E) float32. Returns (1, nClasses) float32."""
    n_in = 1 + len(kernel_params)
    return pl.pallas_call(
        _bilstm_classifier_kernel,
        out_shape=jax.ShapeDtypeStruct((1, NCLASSES), jnp.float32),
        in_specs=[pl.BlockSpec(memory_space=pltpu.MemorySpace.VMEM)] * n_in,
        out_specs=pl.BlockSpec(memory_space=pltpu.MemorySpace.VMEM),
    )(x, *kernel_params)


def init_raw_params(key):
    """PyTorch-shaped parameters, deterministic uniform(-1/sqrt(H), 1/sqrt(H))."""
    H, E, C = HIDDEN, EMBED, NCLASSES
    bound = 1.0 / np.sqrt(H)
    ks = jax.random.split(key, 10)

    def u(k, shape):
        return jax.random.uniform(k, shape, jnp.float32, -bound, bound)

    return dict(
        w_ih_f=u(ks[0], (4 * H, E)), w_hh_f=u(ks[1], (4 * H, H)),
        b_ih_f=u(ks[2], (4 * H,)),   b_hh_f=u(ks[3], (4 * H,)),
        w_ih_b=u(ks[4], (4 * H, E)), w_hh_b=u(ks[5], (4 * H, H)),
        b_ih_b=u(ks[6], (4 * H,)),   b_hh_b=u(ks[7], (4 * H,)),
        w_out=u(ks[8], (C, 2 * H)),  b_out=u(ks[9], (C,)),
    )


def to_kernel_params(p):
    """Fuse/transpose weights into the layout the kernel expects.

    Fused gate column order (8H wide): [i_f, i_b, f_f, f_b, g_f, g_b, o_f, o_b].
    Fused hidden/cell row order (2H): [fwd | bwd].
    """
    H = HIDDEN

    def interleave_gates(wf_t, wb_t):
        # wf_t/wb_t: (K, 4H) with PyTorch gate order [i, f, g, o] along columns.
        blocks = []
        for g in range(4):
            blocks.append(wf_t[:, g * H:(g + 1) * H])
            blocks.append(wb_t[:, g * H:(g + 1) * H])
        return jnp.concatenate(blocks, axis=1)                  # (K, 8H)

    # Fused input-projection weight (E, 8H) and folded bias (1, 8H).
    wih = interleave_gates(p["w_ih_f"].T, p["w_ih_b"].T)
    b_f = (p["b_ih_f"] + p["b_hh_f"]).reshape(1, 4 * H)
    b_b = (p["b_ih_b"] + p["b_hh_b"]).reshape(1, 4 * H)
    b = interleave_gates(b_f, b_b)

    # Block-diagonal recurrent weight (2H, 8H).
    z = jnp.zeros((H, H), jnp.float32)
    wf_t = p["w_hh_f"].T                                         # (H, 4H)
    wb_t = p["w_hh_b"].T
    blocks = []
    for g in range(4):
        blocks.append(jnp.concatenate([wf_t[:, g * H:(g + 1) * H], z], axis=0))  # fwd cols
        blocks.append(jnp.concatenate([z, wb_t[:, g * H:(g + 1) * H]], axis=0))  # bwd cols
    whh = jnp.concatenate(blocks, axis=1)                        # (2H, 8H)

    return (wih, whh, b, p["w_out"].T, p["b_out"].reshape(1, -1))


def reference_forward(x, p):
    """Pure-JAX reference matching PyTorch nn.LSTM(bidirectional=True) + Linear."""
    H = HIDDEN
    T = x.shape[0]

    def run_dir(w_ih, w_hh, b_ih, b_hh, order):
        h = jnp.zeros((1, H), jnp.float32)
        c = jnp.zeros((1, H), jnp.float32)
        for t in order:
            g = x[t:t + 1] @ w_ih.T + b_ih + h @ w_hh.T + b_hh
            i = jax.nn.sigmoid(g[:, 0 * H:1 * H])
            f = jax.nn.sigmoid(g[:, 1 * H:2 * H])
            gg = jnp.tanh(g[:, 2 * H:3 * H])
            o = jax.nn.sigmoid(g[:, 3 * H:4 * H])
            c = f * c + i * gg
            h = o * jnp.tanh(c)
        return h

    h_f = run_dir(p["w_ih_f"], p["w_hh_f"], p["b_ih_f"], p["b_hh_f"], range(T))
    h_b = run_dir(p["w_ih_b"], p["w_hh_b"], p["b_ih_b"], p["b_hh_b"], range(T - 1, -1, -1))
    hidden = jnp.concatenate([h_f, h_b], axis=1)
    return hidden @ p["w_out"].T + p["b_out"].reshape(1, -1)


if __name__ == "__main__":
    key = jax.random.PRNGKey(0)
    k_x, k_p = jax.random.split(key)

    # in_seq: any shape that views to (T, 1, E); here given directly as (T, E).
    x = jax.random.normal(k_x, (SEQ, EMBED), jnp.float32)
    raw = init_raw_params(k_p)
    kparams = to_kernel_params(raw)

    out = bilstm_classifier(x, kparams)
    out = jax.block_until_ready(out)

    ref = reference_forward(x, raw)
    assert out.shape == (1, NCLASSES)
    np.testing.assert_allclose(np.asarray(out), np.asarray(ref), rtol=1e-4, atol=1e-4)

    print("KERNEL_OK")
</pallas_src>

<mosaic_0001>
module attributes {stable_mosaic.version = 11 : i64} {
  func.func @_bilstm_classifier_kernel(%arg0: memref<8x32xf32, #tpu.memory_space<vmem>>, %arg1: memref<32x256xf32, #tpu.memory_space<vmem>>, %arg2: memref<64x256xf32, #tpu.memory_space<vmem>>, %arg3: memref<1x256xf32, #tpu.memory_space<vmem>>, %arg4: memref<64x8xf32, #tpu.memory_space<vmem>>, %arg5: memref<1x8xf32, #tpu.memory_space<vmem>>, %arg6: memref<1x8xf32, #tpu.memory_space<vmem>>) attributes {dimension_semantics = [], scalar_prefetch = 0 : i64, scratch_operands = 0 : i64, tpu.core_type = #tpu.core_type<tc>} {
    %c0 = arith.constant 0 : index
    %c0_0 = arith.constant 0 : index
    %0 = vector.load %arg0[%c0, %c0_0] : memref<8x32xf32, #tpu.memory_space<vmem>>, vector<8x32xf32>
    %c0_1 = arith.constant 0 : index
    %c0_2 = arith.constant 0 : index
    %1 = vector.load %arg1[%c0_1, %c0_2] : memref<32x256xf32, #tpu.memory_space<vmem>>, vector<32x256xf32>
    %cst = arith.constant dense<0.000000e+00> : vector<8x256xf32>
    %2 = tpu.matmul %0, %1, %cst {dimension_numbers = #tpu.dot_dimension_numbers<[1], [0], [0], [1], [0, 0, 1, 1], [], []>} : vector<8x32xf32>, vector<32x256xf32>, vector<8x256xf32> -> vector<8x256xf32>
    %c0_3 = arith.constant 0 : index
    %c0_4 = arith.constant 0 : index
    %3 = vector.load %arg3[%c0_3, %c0_4] : memref<1x256xf32, #tpu.memory_space<vmem>>, vector<1x256xf32>
    %4 = vector.broadcast %3 : vector<1x256xf32> to vector<8x256xf32>
    %5 = arith.addf %2, %4 : vector<8x256xf32>
    %c0_5 = arith.constant 0 : index
    %c0_6 = arith.constant 0 : index
    %6 = vector.load %arg2[%c0_5, %c0_6] : memref<64x256xf32, #tpu.memory_space<vmem>>, vector<64x256xf32>
    %7 = tpu.iota {dimensions = array<i32: 1>} : vector<1x256xi32>
    %c63_i32 = arith.constant 63 : i32
    %8 = vector.broadcast %c63_i32 : i32 to vector<1x256xi32>
    %9 = arith.andi %7, %8 : vector<1x256xi32>
    %c32_i32 = arith.constant 32 : i32
    %10 = vector.broadcast %c32_i32 : i32 to vector<1x256xi32>
    %11 = arith.cmpi slt, %9, %10 : vector<1x256xi32>
    %cst_7 = arith.constant 0.000000e+00 : f32
    %12 = vector.broadcast %cst_7 : f32 to vector<1x64xf32>
    %cst_8 = arith.constant 0.000000e+00 : f32
    %13 = vector.broadcast %cst_8 : f32 to vector<1x64xf32>
    %14 = vector.extract_strided_slice %5 {offsets = [0, 0], sizes = [1, 256], strides = [1, 1]} : vector<8x256xf32> to vector<1x256xf32>
    %15 = vector.extract_strided_slice %5 {offsets = [7, 0], sizes = [1, 256], strides = [1, 1]} : vector<8x256xf32> to vector<1x256xf32>
    %16 = arith.select %11, %14, %15 : vector<1x256xi1>, vector<1x256xf32>
    %cst_9 = arith.constant dense<0.000000e+00> : vector<1x256xf32>
    %17 = tpu.matmul %12, %6, %cst_9 {dimension_numbers = #tpu.dot_dimension_numbers<[1], [0], [0], [1], [0, 0, 1, 1], [], []>} : vector<1x64xf32>, vector<64x256xf32>, vector<1x256xf32> -> vector<1x256xf32>
    %18 = arith.addf %16, %17 : vector<1x256xf32>
    %19 = vector.extract_strided_slice %18 {offsets = [0, 0], sizes = [1, 64], strides = [1, 1]} : vector<1x256xf32> to vector<1x64xf32>
    %20 = arith.negf %19 : vector<1x64xf32>
    %21 = math.exp %20 : vector<1x64xf32>
    %cst_10 = arith.constant 1.000000e+00 : f32
    %22 = vector.broadcast %cst_10 : f32 to vector<1x64xf32>
    %23 = arith.addf %22, %21 : vector<1x64xf32>
    %24 = arith.divf %22, %23 : vector<1x64xf32>
    %25 = vector.extract_strided_slice %18 {offsets = [0, 64], sizes = [1, 64], strides = [1, 1]} : vector<1x256xf32> to vector<1x64xf32>
    %26 = arith.negf %25 : vector<1x64xf32>
    %27 = math.exp %26 : vector<1x64xf32>
    %cst_11 = arith.constant 1.000000e+00 : f32
    %28 = vector.broadcast %cst_11 : f32 to vector<1x64xf32>
    %29 = arith.addf %28, %27 : vector<1x64xf32>
    %30 = arith.divf %28, %29 : vector<1x64xf32>
    %31 = vector.extract_strided_slice %18 {offsets = [0, 128], sizes = [1, 64], strides = [1, 1]} : vector<1x256xf32> to vector<1x64xf32>
    %32 = math.tanh %31 : vector<1x64xf32>
    %33 = vector.extract_strided_slice %18 {offsets = [0, 192], sizes = [1, 64], strides = [1, 1]} : vector<1x256xf32> to vector<1x64xf32>
    %34 = arith.negf %33 : vector<1x64xf32>
    %35 = math.exp %34 : vector<1x64xf32>
    %cst_12 = arith.constant 1.000000e+00 : f32
    %36 = vector.broadcast %cst_12 : f32 to vector<1x64xf32>
    %37 = arith.addf %36, %35 : vector<1x64xf32>
    %38 = arith.divf %36, %37 : vector<1x64xf32>
    %39 = arith.mulf %30, %13 : vector<1x64xf32>
    %40 = arith.mulf %24, %32 : vector<1x64xf32>
    %41 = arith.addf %39, %40 : vector<1x64xf32>
    %42 = math.tanh %41 : vector<1x64xf32>
    %43 = arith.mulf %38, %42 : vector<1x64xf32>
    %44 = vector.extract_strided_slice %5 {offsets = [1, 0], sizes = [1, 256], strides = [1, 1]} : vector<8x256xf32> to vector<1x256xf32>
    %45 = vector.extract_strided_slice %5 {offsets = [6, 0], sizes = [1, 256], strides = [1, 1]} : vector<8x256xf32> to vector<1x256xf32>
    %46 = arith.select %11, %44, %45 : vector<1x256xi1>, vector<1x256xf32>
    %cst_13 = arith.constant dense<0.000000e+00> : vector<1x256xf32>
    %47 = tpu.matmul %43, %6, %cst_13 {dimension_numbers = #tpu.dot_dimension_numbers<[1], [0], [0], [1], [0, 0, 1, 1], [], []>} : vector<1x64xf32>, vector<64x256xf32>, vector<1x256xf32> -> vector<1x256xf32>
    %48 = arith.addf %46, %47 : vector<1x256xf32>
    %49 = vector.extract_strided_slice %48 {offsets = [0, 0], sizes = [1, 64], strides = [1, 1]} : vector<1x256xf32> to vector<1x64xf32>
    %50 = arith.negf %49 : vector<1x64xf32>
    %51 = math.exp %50 : vector<1x64xf32>
    %cst_14 = arith.constant 1.000000e+00 : f32
    %52 = vector.broadcast %cst_14 : f32 to vector<1x64xf32>
    %53 = arith.addf %52, %51 : vector<1x64xf32>
    %54 = arith.divf %52, %53 : vector<1x64xf32>
    %55 = vector.extract_strided_slice %48 {offsets = [0, 64], sizes = [1, 64], strides = [1, 1]} : vector<1x256xf32> to vector<1x64xf32>
    %56 = arith.negf %55 : vector<1x64xf32>
    %57 = math.exp %56 : vector<1x64xf32>
    %cst_15 = arith.constant 1.000000e+00 : f32
    %58 = vector.broadcast %cst_15 : f32 to vector<1x64xf32>
    %59 = arith.addf %58, %57 : vector<1x64xf32>
    %60 = arith.divf %58, %59 : vector<1x64xf32>
    %61 = vector.extract_strided_slice %48 {offsets = [0, 128], sizes = [1, 64], strides = [1, 1]} : vector<1x256xf32> to vector<1x64xf32>
    %62 = math.tanh %61 : vector<1x64xf32>
    %63 = vector.extract_strided_slice %48 {offsets = [0, 192], sizes = [1, 64], strides = [1, 1]} : vector<1x256xf32> to vector<1x64xf32>
    %64 = arith.negf %63 : vector<1x64xf32>
    %65 = math.exp %64 : vector<1x64xf32>
    %cst_16 = arith.constant 1.000000e+00 : f32
    %66 = vector.broadcast %cst_16 : f32 to vector<1x64xf32>
    %67 = arith.addf %66, %65 : vector<1x64xf32>
    %68 = arith.divf %66, %67 : vector<1x64xf32>
    %69 = arith.mulf %60, %41 : vector<1x64xf32>
    %70 = arith.mulf %54, %62 : vector<1x64xf32>
    %71 = arith.addf %69, %70 : vector<1x64xf32>
    %72 = math.tanh %71 : vector<1x64xf32>
    %73 = arith.mulf %68, %72 : vector<1x64xf32>
    %74 = vector.extract_strided_slice %5 {offsets = [2, 0], sizes = [1, 256], strides = [1, 1]} : vector<8x256xf32> to vector<1x256xf32>
    %75 = vector.extract_strided_slice %5 {offsets = [5, 0], sizes = [1, 256], strides = [1, 1]} : vector<8x256xf32> to vector<1x256xf32>
    %76 = arith.select %11, %74, %75 : vector<1x256xi1>, vector<1x256xf32>
    %cst_17 = arith.constant dense<0.000000e+00> : vector<1x256xf32>
    %77 = tpu.matmul %73, %6, %cst_17 {dimension_numbers = #tpu.dot_dimension_numbers<[1], [0], [0], [1], [0, 0, 1, 1], [], []>} : vector<1x64xf32>, vector<64x256xf32>, vector<1x256xf32> -> vector<1x256xf32>
    %78 = arith.addf %76, %77 : vector<1x256xf32>
    %79 = vector.extract_strided_slice %78 {offsets = [0, 0], sizes = [1, 64], strides = [1, 1]} : vector<1x256xf32> to vector<1x64xf32>
    %80 = arith.negf %79 : vector<1x64xf32>
    %81 = math.exp %80 : vector<1x64xf32>
    %cst_18 = arith.constant 1.000000e+00 : f32
    %82 = vector.broadcast %cst_18 : f32 to vector<1x64xf32>
    %83 = arith.addf %82, %81 : vector<1x64xf32>
    %84 = arith.divf %82, %83 : vector<1x64xf32>
    %85 = vector.extract_strided_slice %78 {offsets = [0, 64], sizes = [1, 64], strides = [1, 1]} : vector<1x256xf32> to vector<1x64xf32>
    %86 = arith.negf %85 : vector<1x64xf32>
    %87 = math.exp %86 : vector<1x64xf32>
    %cst_19 = arith.constant 1.000000e+00 : f32
    %88 = vector.broadcast %cst_19 : f32 to vector<1x64xf32>
    %89 = arith.addf %88, %87 : vector<1x64xf32>
    %90 = arith.divf %88, %89 : vector<1x64xf32>
    %91 = vector.extract_strided_slice %78 {offsets = [0, 128], sizes = [1, 64], strides = [1, 1]} : vector<1x256xf32> to vector<1x64xf32>
    %92 = math.tanh %91 : vector<1x64xf32>
    %93 = vector.extract_strided_slice %78 {offsets = [0, 192], sizes = [1, 64], strides = [1, 1]} : vector<1x256xf32> to vector<1x64xf32>
    %94 = arith.negf %93 : vector<1x64xf32>
    %95 = math.exp %94 : vector<1x64xf32>
    %cst_20 = arith.constant 1.000000e+00 : f32
    %96 = vector.broadcast %cst_20 : f32 to vector<1x64xf32>
    %97 = arith.addf %96, %95 : vector<1x64xf32>
    %98 = arith.divf %96, %97 : vector<1x64xf32>
    %99 = arith.mulf %90, %71 : vector<1x64xf32>
    %100 = arith.mulf %84, %92 : vector<1x64xf32>
    %101 = arith.addf %99, %100 : vector<1x64xf32>
    %102 = math.tanh %101 : vector<1x64xf32>
    %103 = arith.mulf %98, %102 : vector<1x64xf32>
    %104 = vector.extract_strided_slice %5 {offsets = [3, 0], sizes = [1, 256], strides = [1, 1]} : vector<8x256xf32> to vector<1x256xf32>
    %105 = vector.extract_strided_slice %5 {offsets = [4, 0], sizes = [1, 256], strides = [1, 1]} : vector<8x256xf32> to vector<1x256xf32>
    %106 = arith.select %11, %104, %105 : vector<1x256xi1>, vector<1x256xf32>
    %cst_21 = arith.constant dense<0.000000e+00> : vector<1x256xf32>
    %107 = tpu.matmul %103, %6, %cst_21 {dimension_numbers = #tpu.dot_dimension_numbers<[1], [0], [0], [1], [0, 0, 1, 1], [], []>} : vector<1x64xf32>, vector<64x256xf32>, vector<1x256xf32> -> vector<1x256xf32>
    %108 = arith.addf %106, %107 : vector<1x256xf32>
    %109 = vector.extract_strided_slice %108 {offsets = [0, 0], sizes = [1, 64], strides = [1, 1]} : vector<1x256xf32> to vector<1x64xf32>
    %110 = arith.negf %109 : vector<1x64xf32>
    %111 = math.exp %110 : vector<1x64xf32>
    %cst_22 = arith.constant 1.000000e+00 : f32
    %112 = vector.broadcast %cst_22 : f32 to vector<1x64xf32>
    %113 = arith.addf %112, %111 : vector<1x64xf32>
    %114 = arith.divf %112, %113 : vector<1x64xf32>
    %115 = vector.extract_strided_slice %108 {offsets = [0, 64], sizes = [1, 64], strides = [1, 1]} : vector<1x256xf32> to vector<1x64xf32>
    %116 = arith.negf %115 : vector<1x64xf32>
    %117 = math.exp %116 : vector<1x64xf32>
    %cst_23 = arith.constant 1.000000e+00 : f32
    %118 = vector.broadcast %cst_23 : f32 to vector<1x64xf32>
    %119 = arith.addf %118, %117 : vector<1x64xf32>
    %120 = arith.divf %118, %119 : vector<1x64xf32>
    %121 = vector.extract_strided_slice %108 {offsets = [0, 128], sizes = [1, 64], strides = [1, 1]} : vector<1x256xf32> to vector<1x64xf32>
    %122 = math.tanh %121 : vector<1x64xf32>
    %123 = vector.extract_strided_slice %108 {offsets = [0, 192], sizes = [1, 64], strides = [1, 1]} : vector<1x256xf32> to vector<1x64xf32>
    %124 = arith.negf %123 : vector<1x64xf32>
    %125 = math.exp %124 : vector<1x64xf32>
    %cst_24 = arith.constant 1.000000e+00 : f32
    %126 = vector.broadcast %cst_24 : f32 to vector<1x64xf32>
    %127 = arith.addf %126, %125 : vector<1x64xf32>
    %128 = arith.divf %126, %127 : vector<1x64xf32>
    %129 = arith.mulf %120, %101 : vector<1x64xf32>
    %130 = arith.mulf %114, %122 : vector<1x64xf32>
    %131 = arith.addf %129, %130 : vector<1x64xf32>
    %132 = math.tanh %131 : vector<1x64xf32>
    %133 = arith.mulf %128, %132 : vector<1x64xf32>
    %134 = vector.extract_strided_slice %5 {offsets = [4, 0], sizes = [1, 256], strides = [1, 1]} : vector<8x256xf32> to vector<1x256xf32>
    %135 = vector.extract_strided_slice %5 {offsets = [3, 0], sizes = [1, 256], strides = [1, 1]} : vector<8x256xf32> to vector<1x256xf32>
    %136 = arith.select %11, %134, %135 : vector<1x256xi1>, vector<1x256xf32>
    %cst_25 = arith.constant dense<0.000000e+00> : vector<1x256xf32>
    %137 = tpu.matmul %133, %6, %cst_25 {dimension_numbers = #tpu.dot_dimension_numbers<[1], [0], [0], [1], [0, 0, 1, 1], [], []>} : vector<1x64xf32>, vector<64x256xf32>, vector<1x256xf32> -> vector<1x256xf32>
    %138 = arith.addf %136, %137 : vector<1x256xf32>
    %139 = vector.extract_strided_slice %138 {offsets = [0, 0], sizes = [1, 64], strides = [1, 1]} : vector<1x256xf32> to vector<1x64xf32>
    %140 = arith.negf %139 : vector<1x64xf32>
    %141 = math.exp %140 : vector<1x64xf32>
    %cst_26 = arith.constant 1.000000e+00 : f32
    %142 = vector.broadcast %cst_26 : f32 to vector<1x64xf32>
    %143 = arith.addf %142, %141 : vector<1x64xf32>
    %144 = arith.divf %142, %143 : vector<1x64xf32>
    %145 = vector.extract_strided_slice %138 {offsets = [0, 64], sizes = [1, 64], strides = [1, 1]} : vector<1x256xf32> to vector<1x64xf32>
    %146 = arith.negf %145 : vector<1x64xf32>
    %147 = math.exp %146 : vector<1x64xf32>
    %cst_27 = arith.constant 1.000000e+00 : f32
    %148 = vector.broadcast %cst_27 : f32 to vector<1x64xf32>
    %149 = arith.addf %148, %147 : vector<1x64xf32>
    %150 = arith.divf %148, %149 : vector<1x64xf32>
    %151 = vector.extract_strided_slice %138 {offsets = [0, 128], sizes = [1, 64], strides = [1, 1]} : vector<1x256xf32> to vector<1x64xf32>
    %152 = math.tanh %151 : vector<1x64xf32>
    %153 = vector.extract_strided_slice %138 {offsets = [0, 192], sizes = [1, 64], strides = [1, 1]} : vector<1x256xf32> to vector<1x64xf32>
    %154 = arith.negf %153 : vector<1x64xf32>
    %155 = math.exp %154 : vector<1x64xf32>
    %cst_28 = arith.constant 1.000000e+00 : f32
    %156 = vector.broadcast %cst_28 : f32 to vector<1x64xf32>
    %157 = arith.addf %156, %155 : vector<1x64xf32>
    %158 = arith.divf %156, %157 : vector<1x64xf32>
    %159 = arith.mulf %150, %131 : vector<1x64xf32>
    %160 = arith.mulf %144, %152 : vector<1x64xf32>
    %161 = arith.addf %159, %160 : vector<1x64xf32>
    %162 = math.tanh %161 : vector<1x64xf32>
    %163 = arith.mulf %158, %162 : vector<1x64xf32>
    %164 = vector.extract_strided_slice %5 {offsets = [5, 0], sizes = [1, 256], strides = [1, 1]} : vector<8x256xf32> to vector<1x256xf32>
    %165 = vector.extract_strided_slice %5 {offsets = [2, 0], sizes = [1, 256], strides = [1, 1]} : vector<8x256xf32> to vector<1x256xf32>
    %166 = arith.select %11, %164, %165 : vector<1x256xi1>, vector<1x256xf32>
    %cst_29 = arith.constant dense<0.000000e+00> : vector<1x256xf32>
    %167 = tpu.matmul %163, %6, %cst_29 {dimension_numbers = #tpu.dot_dimension_numbers<[1], [0], [0], [1], [0, 0, 1, 1], [], []>} : vector<1x64xf32>, vector<64x256xf32>, vector<1x256xf32> -> vector<1x256xf32>
    %168 = arith.addf %166, %167 : vector<1x256xf32>
    %169 = vector.extract_strided_slice %168 {offsets = [0, 0], sizes = [1, 64], strides = [1, 1]} : vector<1x256xf32> to vector<1x64xf32>
    %170 = arith.negf %169 : vector<1x64xf32>
    %171 = math.exp %170 : vector<1x64xf32>
    %cst_30 = arith.constant 1.000000e+00 : f32
    %172 = vector.broadcast %cst_30 : f32 to vector<1x64xf32>
    %173 = arith.addf %172, %171 : vector<1x64xf32>
    %174 = arith.divf %172, %173 : vector<1x64xf32>
    %175 = vector.extract_strided_slice %168 {offsets = [0, 64], sizes = [1, 64], strides = [1, 1]} : vector<1x256xf32> to vector<1x64xf32>
    %176 = arith.negf %175 : vector<1x64xf32>
    %177 = math.exp %176 : vector<1x64xf32>
    %cst_31 = arith.constant 1.000000e+00 : f32
    %178 = vector.broadcast %cst_31 : f32 to vector<1x64xf32>
    %179 = arith.addf %178, %177 : vector<1x64xf32>
    %180 = arith.divf %178, %179 : vector<1x64xf32>
    %181 = vector.extract_strided_slice %168 {offsets = [0, 128], sizes = [1, 64], strides = [1, 1]} : vector<1x256xf32> to vector<1x64xf32>
    %182 = math.tanh %181 : vector<1x64xf32>
    %183 = vector.extract_strided_slice %168 {offsets = [0, 192], sizes = [1, 64], strides = [1, 1]} : vector<1x256xf32> to vector<1x64xf32>
    %184 = arith.negf %183 : vector<1x64xf32>
    %185 = math.exp %184 : vector<1x64xf32>
    %cst_32 = arith.constant 1.000000e+00 : f32
    %186 = vector.broadcast %cst_32 : f32 to vector<1x64xf32>
    %187 = arith.addf %186, %185 : vector<1x64xf32>
    %188 = arith.divf %186, %187 : vector<1x64xf32>
    %189 = arith.mulf %180, %161 : vector<1x64xf32>
    %190 = arith.mulf %174, %182 : vector<1x64xf32>
    %191 = arith.addf %189, %190 : vector<1x64xf32>
    %192 = math.tanh %191 : vector<1x64xf32>
    %193 = arith.mulf %188, %192 : vector<1x64xf32>
    %194 = vector.extract_strided_slice %5 {offsets = [6, 0], sizes = [1, 256], strides = [1, 1]} : vector<8x256xf32> to vector<1x256xf32>
    %195 = vector.extract_strided_slice %5 {offsets = [1, 0], sizes = [1, 256], strides = [1, 1]} : vector<8x256xf32> to vector<1x256xf32>
    %196 = arith.select %11, %194, %195 : vector<1x256xi1>, vector<1x256xf32>
    %cst_33 = arith.constant dense<0.000000e+00> : vector<1x256xf32>
    %197 = tpu.matmul %193, %6, %cst_33 {dimension_numbers = #tpu.dot_dimension_numbers<[1], [0], [0], [1], [0, 0, 1, 1], [], []>} : vector<1x64xf32>, vector<64x256xf32>, vector<1x256xf32> -> vector<1x256xf32>
    %198 = arith.addf %196, %197 : vector<1x256xf32>
    %199 = vector.extract_strided_slice %198 {offsets = [0, 0], sizes = [1, 64], strides = [1, 1]} : vector<1x256xf32> to vector<1x64xf32>
    %200 = arith.negf %199 : vector<1x64xf32>
    %201 = math.exp %200 : vector<1x64xf32>
    %cst_34 = arith.constant 1.000000e+00 : f32
    %202 = vector.broadcast %cst_34 : f32 to vector<1x64xf32>
    %203 = arith.addf %202, %201 : vector<1x64xf32>
    %204 = arith.divf %202, %203 : vector<1x64xf32>
    %205 = vector.extract_strided_slice %198 {offsets = [0, 64], sizes = [1, 64], strides = [1, 1]} : vector<1x256xf32> to vector<1x64xf32>
    %206 = arith.negf %205 : vector<1x64xf32>
    %207 = math.exp %206 : vector<1x64xf32>
    %cst_35 = arith.constant 1.000000e+00 : f32
    %208 = vector.broadcast %cst_35 : f32 to vector<1x64xf32>
    %209 = arith.addf %208, %207 : vector<1x64xf32>
    %210 = arith.divf %208, %209 : vector<1x64xf32>
    %211 = vector.extract_strided_slice %198 {offsets = [0, 128], sizes = [1, 64], strides = [1, 1]} : vector<1x256xf32> to vector<1x64xf32>
    %212 = math.tanh %211 : vector<1x64xf32>
    %213 = vector.extract_strided_slice %198 {offsets = [0, 192], sizes = [1, 64], strides = [1, 1]} : vector<1x256xf32> to vector<1x64xf32>
    %214 = arith.negf %213 : vector<1x64xf32>
    %215 = math.exp %214 : vector<1x64xf32>
    %cst_36 = arith.constant 1.000000e+00 : f32
    %216 = vector.broadcast %cst_36 : f32 to vector<1x64xf32>
    %217 = arith.addf %216, %215 : vector<1x64xf32>
    %218 = arith.divf %216, %217 : vector<1x64xf32>
    %219 = arith.mulf %210, %191 : vector<1x64xf32>
    %220 = arith.mulf %204, %212 : vector<1x64xf32>
    %221 = arith.addf %219, %220 : vector<1x64xf32>
    %222 = math.tanh %221 : vector<1x64xf32>
    %223 = arith.mulf %218, %222 : vector<1x64xf32>
    %224 = vector.extract_strided_slice %5 {offsets = [7, 0], sizes = [1, 256], strides = [1, 1]} : vector<8x256xf32> to vector<1x256xf32>
    %225 = vector.extract_strided_slice %5 {offsets = [0, 0], sizes = [1, 256], strides = [1, 1]} : vector<8x256xf32> to vector<1x256xf32>
    %226 = arith.select %11, %224, %225 : vector<1x256xi1>, vector<1x256xf32>
    %cst_37 = arith.constant dense<0.000000e+00> : vector<1x256xf32>
    %227 = tpu.matmul %223, %6, %cst_37 {dimension_numbers = #tpu.dot_dimension_numbers<[1], [0], [0], [1], [0, 0, 1, 1], [], []>} : vector<1x64xf32>, vector<64x256xf32>, vector<1x256xf32> -> vector<1x256xf32>
    %228 = arith.addf %226, %227 : vector<1x256xf32>
    %229 = vector.extract_strided_slice %228 {offsets = [0, 0], sizes = [1, 64], strides = [1, 1]} : vector<1x256xf32> to vector<1x64xf32>
    %230 = arith.negf %229 : vector<1x64xf32>
    %231 = math.exp %230 : vector<1x64xf32>
    %cst_38 = arith.constant 1.000000e+00 : f32
    %232 = vector.broadcast %cst_38 : f32 to vector<1x64xf32>
    %233 = arith.addf %232, %231 : vector<1x64xf32>
    %234 = arith.divf %232, %233 : vector<1x64xf32>
    %235 = vector.extract_strided_slice %228 {offsets = [0, 64], sizes = [1, 64], strides = [1, 1]} : vector<1x256xf32> to vector<1x64xf32>
    %236 = arith.negf %235 : vector<1x64xf32>
    %237 = math.exp %236 : vector<1x64xf32>
    %cst_39 = arith.constant 1.000000e+00 : f32
    %238 = vector.broadcast %cst_39 : f32 to vector<1x64xf32>
    %239 = arith.addf %238, %237 : vector<1x64xf32>
    %240 = arith.divf %238, %239 : vector<1x64xf32>
    %241 = vector.extract_strided_slice %228 {offsets = [0, 128], sizes = [1, 64], strides = [1, 1]} : vector<1x256xf32> to vector<1x64xf32>
    %242 = math.tanh %241 : vector<1x64xf32>
    %243 = vector.extract_strided_slice %228 {offsets = [0, 192], sizes = [1, 64], strides = [1, 1]} : vector<1x256xf32> to vector<1x64xf32>
    %244 = arith.negf %243 : vector<1x64xf32>
    %245 = math.exp %244 : vector<1x64xf32>
    %cst_40 = arith.constant 1.000000e+00 : f32
    %246 = vector.broadcast %cst_40 : f32 to vector<1x64xf32>
    %247 = arith.addf %246, %245 : vector<1x64xf32>
    %248 = arith.divf %246, %247 : vector<1x64xf32>
    %249 = arith.mulf %240, %221 : vector<1x64xf32>
    %250 = arith.mulf %234, %242 : vector<1x64xf32>
    %251 = arith.addf %249, %250 : vector<1x64xf32>
    %252 = math.tanh %251 : vector<1x64xf32>
    %253 = arith.mulf %248, %252 : vector<1x64xf32>
    %c0_41 = arith.constant 0 : index
    %c0_42 = arith.constant 0 : index
    %254 = vector.load %arg4[%c0_41, %c0_42] : memref<64x8xf32, #tpu.memory_space<vmem>>, vector<64x8xf32>
    %cst_43 = arith.constant dense<0.000000e+00> : vector<1x8xf32>
    %255 = tpu.matmul %253, %254, %cst_43 {dimension_numbers = #tpu.dot_dimension_numbers<[1], [0], [0], [1], [0, 0, 1, 1], [], []>} : vector<1x64xf32>, vector<64x8xf32>, vector<1x8xf32> -> vector<1x8xf32>
    %c0_44 = arith.constant 0 : index
    %c0_45 = arith.constant 0 : index
    %256 = vector.load %arg5[%c0_44, %c0_45] : memref<1x8xf32, #tpu.memory_space<vmem>>, vector<1x8xf32>
    %257 = arith.addf %255, %256 : vector<1x8xf32>
    %c0_46 = arith.constant 0 : index
    %c0_47 = arith.constant 0 : index
    %258 = vector.load %arg6[%c0_46, %c0_47] : memref<1x8xf32, #tpu.memory_space<vmem>>, vector<1x8xf32>
    tpu.vector_store %arg6[%c0_46, %c0_47], %257 {strides = array<i32>} : memref<1x8xf32, #tpu.memory_space<vmem>>, vector<1x8xf32>,
    return
  }
}

</mosaic_0001>

<llo_original>
// kernel: tpu_custom_call.1
$region0: #{tpu_custom_call.1}
  #allocation0 [shape = 'u32[]', space=smem, size = 0x4, offset = 0x4, fixed_abs, tag = 'smem constant byte address 0x4 - core index']
  #allocation1 [shape = 'u32[144,128]{1,0:T(1,128)}', space=vmem, size = 0x12000, scoped, tag = 'internal scratch']
  %s0 = inlined_call_operand.vmem [shape: f32[8,32], index: 0, kind: input, shape index: {}]
  %s1 = inlined_call_operand.vmem [shape: f32[32,256], index: 1, kind: input, shape index: {}]
  %s2 = inlined_call_operand.hbm [shape: f32[64,256], index: 2, kind: input, shape index: {}]
  %s3 = inlined_call_operand.vmem [shape: f32[1,256], index: 3, kind: input, shape index: {}]
  %s4 = inlined_call_operand.vmem [shape: f32[64,8], index: 4, kind: input, shape index: {}]
  %s5 = inlined_call_operand.vmem [shape: f32[1,8], index: 5, kind: input, shape index: {}]
  %s6 = inlined_call_operand.hbm [shape: f32[1,8], index: 6, kind: output, shape index: {}]
  %s7 = sld [smem:[#allocation0]]
  $region38: #{tpu_custom_call.1} parent=0
    _
  %s9 = ssub.s32 1, %s7
  %s10 = scalar_select 0, %s9, %s7
  $region1: #{tpu_custom_call.1} parent=0
    #allocation2 [shape = 'u8[65536]{0}', space=vmem, size = 0x10000, scoped, tag = 'input window, operand 2, single buffered']
    #allocation3 [shape = 's32[1]{0}', space=sflag, size = 0x4, scoped, tag = 'scoped memory for tpu_custom_call.1']
    #allocation4 [shape = 's32[1]{0}', space=sflag, size = 0x4, scoped, tag = 'scoped memory for tpu_custom_call.1']
    #allocation5 [shape = 'u8[512]{0}', space=vmem, size = 0x400, scoped, tag = 'output window, operand 0, single buffered']
    %11 = vsyncpa [#allocation3], 0
    %12 = vsyncpa [#allocation4], 0
    // Predicated region
    $region2: #{tpu_custom_call.1} parent=1 // pred_check
      _
    $region3: #{tpu_custom_call.1} parent=1 // pred_check_branch
      %14 = sbr.rel (0) target = $region5
    $region4: #{tpu_custom_call.1} parent=1 // pred_region
      _
    $region5: #{tpu_custom_call.1} parent=1 // pred_fallthru
      _
    // Predicated region
    $region6: #{tpu_custom_call.1} parent=1 // pred_check
      _
    $region7: #{tpu_custom_call.1} parent=1 // pred_check_branch
      %16 = sbr.rel (0) target = $region9
    $region8: #{tpu_custom_call.1} parent=1 // pred_region
      _
    $region9: #{tpu_custom_call.1} parent=1 // pred_fallthru
      _
    // Predicated region
    $region10: #{tpu_custom_call.1} parent=1 // pred_check
      _
    $region11: #{tpu_custom_call.1} parent=1 // pred_check_branch
      %18 = sbr.rel (0) target = $region13
    $region12: #{tpu_custom_call.1} parent=1 // pred_region
      %s20 = ssub.s32 2048, 2048
      %21 = vsyncadd [#allocation3], %s20
      %s22 = sshll.u32 [#allocation2], 4
      %s23 = int_to_ptr.vmem [resolvable:$true] %s22
      %28 = dma.hbm_to_vmem [thread:$0]  %s2, 2048, %s23, [#allocation3], 256, 256, 16
    $region13: #{tpu_custom_call.1} parent=1 // pred_fallthru
      _
    // Predicated region
    $region14: #{tpu_custom_call.1} parent=1 // pred_check
      _
    $region15: #{tpu_custom_call.1} parent=1 // pred_check_branch
      %30 = sbr.rel (0) target = $region17
    $region16: #{tpu_custom_call.1} parent=1 // pred_region
      _
    $region17: #{tpu_custom_call.1} parent=1 // pred_fallthru
      _
    // Predicated region
    $region18: #{tpu_custom_call.1} parent=1 // pred_check
      _
    $region19: #{tpu_custom_call.1} parent=1 // pred_check_branch
      %32 = sbr.rel (0) target = $region21
    $region20: #{tpu_custom_call.1} parent=1 // pred_region
      _
    $region21: #{tpu_custom_call.1} parent=1 // pred_fallthru
      _
    // Predicated region
    $region22: #{tpu_custom_call.1} parent=1 // pred_check
      _
    $region23: #{tpu_custom_call.1} parent=1 // pred_check_branch
      %34 = sbr.rel (0) target = $region25
    $region24: #{tpu_custom_call.1} parent=1 // pred_region
      _
    $region25: #{tpu_custom_call.1} parent=1 // pred_fallthru
      _
    // Predicated region
    $region26: #{tpu_custom_call.1} parent=1 // pred_check
      _
    $region27: #{tpu_custom_call.1} parent=1 // pred_check_branch
      %36 = sbr.rel (0) target = $region29
    $region28: #{tpu_custom_call.1} parent=1 // pred_region
      %37 = dma.done [#allocation3], 2048
    $region29: #{tpu_custom_call.1} parent=1 // pred_fallthru
      _
    %v38 = vld [vmem:[%s0] sm:$0xff]
    %v39 = vld [vmem:[%s1] sm:$0xff]
    %v40 = vld [vmem:[%s1 + $0x8] sm:$0xff]
    %v41 = vld [vmem:[%s1 + $0x10] sm:$0xff]
    %v42 = vld [vmem:[%s1 + $0x18] sm:$0xff]
    %v43 = vld [vmem:[%s1 + $0x20] sm:$0xff]
    %v44 = vld [vmem:[%s1 + $0x28] sm:$0xff]
    %v45 = vld [vmem:[%s1 + $0x30] sm:$0xff]
    %v46 = vld [vmem:[%s1 + $0x38] sm:$0xff]
    %v47 = vld [vmem:[%s3] sm:$0x3]
    %v49 = vlaneseq
    %v50 = vshrl.u32 %v49, 7
    %v51 = vsub.s32 0, %v50
    %v52 = vrot.slane %v47, %v51
    %v53 = vlaneseq
    %v54 = vshrl.u32 %v53, 7
    %v55 = vsub.s32 1, %v54
    %v56 = vrot.slane %v47, %v55
    %vm59 = vcmask 261120
    %v61 = vsel %vm59, %v38, 0
    %63 = vmatprep.subr.mxu0 %v40
    %64 = vmatpush1.msra.mxu0 %v39
    %65 = vmatprep.subr.mxu0 %v42
    %66 = vmatpush1.msra.mxu0 %v41
    %67 = vmatprep.subr.mxu0 %v44
    %68 = vmatpush1.msra.mxu0 %v43
    %69 = vmatprep.subr.mxu0 %v46
    %70 = vmatpush1.msra.mxu0 %v45
    %71 = vmatprep.subr.mxu0 0.0
    %72 = vmatpush1.msra.mxu0 0.0
    %73 = vmatprep.subr.mxu0 0.0
    %74 = vmatpush1.msra.mxu0 0.0
    %75 = vmatprep.subr.mxu0 0.0
    %76 = vmatpush1.msra.mxu0 0.0
    %77 = vmatprep.subr.mxu0 0.0
    %78 = vmatpush1.msra.mxu0 0.0
    %79 = vmatprep.subr.mxu0 0.0
    %80 = vmatpush1.msra.mxu0 0.0
    %81 = vmatprep.subr.mxu0 0.0
    %82 = vmatpush1.msra.mxu0 0.0
    %83 = vmatprep.subr.mxu0 0.0
    %84 = vmatpush1.msra.mxu0 0.0
    %85 = vmatprep.subr.mxu0 0.0
    %86 = vmatpush1.msra.mxu0 0.0
    %87 = vmatprep.subr.mxu0 0.0
    %88 = vmatpush1.msra.mxu0 0.0
    %89 = vmatprep.subr.mxu0 0.0
    %90 = vmatpush1.msra.mxu0 0.0
    %91 = vmatprep.subr.mxu0 0.0
    %92 = vmatpush1.msra.mxu0 0.0
    %93 = vmatprep.subr.mxu0 0.0
    %94 = vmatpush1.msra.mxu0 0.0
    %95 = vmatprep.subr.mxu0 0.0
    %96 = vmatpush1.msra.mxu0 0.0
    %97 = vmatprep.subr.mxu0 0.0
    %98 = vmatpush1.msra.mxu0 0.0
    %99 = vmatprep.subr.mxu0 0.0
    %100 = vmatpush1.msra.mxu0 0.0
    %101 = vmatprep.subr.mxu0 0.0
    %102 = vmatpush1.msra.mxu0 0.0
    %103 = vmatprep.subr.mxu0 0.0
    %104 = vmatpush1.msra.mxu0 0.0
    %105 = vmatprep.subr.mxu0 0.0
    %106 = vmatpush1.msra.mxu0 0.0
    %107 = vmatprep.subr.mxu0 0.0
    %108 = vmatpush1.msra.mxu0 0.0
    %109 = vmatprep.subr.mxu0 0.0
    %110 = vmatpush1.msra.mxu0 0.0
    %111 = vmatprep.subr.mxu0 0.0
    %112 = vmatpush1.msra.mxu0 0.0
    %113 = vmatprep.subr.mxu0 0.0
    %114 = vmatpush1.msra.mxu0 0.0
    %115 = vmatprep.subr.mxu0 0.0
    %116 = vmatpush1.msra.mxu0 0.0
    %117 = vmatprep.subr.mxu0 0.0
    %118 = vmatpush1.msra.mxu0 0.0
    %119 = vmatprep.subr.mxu0 0.0
    %120 = vmatpush1.msra.mxu0 0.0
    %121 = vmatprep.subr.mxu0 0.0
    %122 = vmatpush1.msra.mxu0 0.0
    %123 = vmatprep.subr.mxu0 0.0
    %124 = vmatpush1.msra.mxu0 0.0
    %125 = vmatprep.subr.mxu0 0.0
    %126 = vmatpush1.msra.mxu0 0.0
    %127 = vmatprep.mubr.f32.mxu0 0.0
    %128 = vmatmul.mubr.f32.gmra.mrb[0].mxu0 %v61
    %v129 = vpop.f32.mrb[0].mxu0
    %v130 = vadd.f32 %v52, %v129
    %v131 = vpop.f32.mrb[0].mxu0
    %v132 = vadd.f32 %v56, %v131
    %133 = vdwg.mxu0
    %v134 = vld [vmem:[#allocation2] sm:$0xff]
    %v135 = vld [vmem:[#allocation2 + $0x8] sm:$0xff]
    %v136 = vld [vmem:[#allocation2 + $0x10] sm:$0xff]
    %v137 = vld [vmem:[#allocation2 + $0x18] sm:$0xff]
    %v138 = vld [vmem:[#allocation2 + $0x20] sm:$0xff]
    %v139 = vld [vmem:[#allocation2 + $0x28] sm:$0xff]
    %v140 = vld [vmem:[#allocation2 + $0x30] sm:$0xff]
    %v141 = vld [vmem:[#allocation2 + $0x38] sm:$0xff]
    %v142 = vld [vmem:[#allocation2 + $0x40] sm:$0xff]
    %v143 = vld [vmem:[#allocation2 + $0x48] sm:$0xff]
    %v144 = vld [vmem:[#allocation2 + $0x50] sm:$0xff]
    %v145 = vld [vmem:[#allocation2 + $0x58] sm:$0xff]
    %v146 = vld [vmem:[#allocation2 + $0x60] sm:$0xff]
    %v147 = vld [vmem:[#allocation2 + $0x68] sm:$0xff]
    %v148 = vld [vmem:[#allocation2 + $0x70] sm:$0xff]
    %v149 = vld [vmem:[#allocation2 + $0x78] sm:$0xff]
    %v150 = vlaneseq
    %v151 = vand.u32 %v150, 127
    %v152 = vadd.s32 %v151, 128
    %v153 = vand.u32 %v151, 63
    %v154 = vand.u32 %v152, 63
    %vm155 = vcmp.lt.s32.totalorder %v153, 32
    %vm156 = vcmp.lt.s32.totalorder %v154, 32
    %v159 = vrot.slane %v130, 7
    %v160 = vrot.slane %v132, 7
    %v163 = vsel %vm155, %v130, %v159
    %v164 = vsel %vm156, %v132, %v160
    %vm165 = vcmask 523264
    %v167 = vsel %vm165, 0.0, 0
    %169 = vmatprep.subr.mxu0 %v135
    %170 = vmatpush1.msra.mxu0 %v134
    %171 = vmatprep.subr.mxu0 %v137
    %172 = vmatpush1.msra.mxu0 %v136
    %173 = vmatprep.subr.mxu0 %v139
    %174 = vmatpush1.msra.mxu0 %v138
    %175 = vmatprep.subr.mxu0 %v141
    %176 = vmatpush1.msra.mxu0 %v140
    %177 = vmatprep.subr.mxu0 %v143
    %178 = vmatpush1.msra.mxu0 %v142
    %179 = vmatprep.subr.mxu0 %v145
    %180 = vmatpush1.msra.mxu0 %v144
    %181 = vmatprep.subr.mxu0 %v147
    %182 = vmatpush1.msra.mxu0 %v146
    %183 = vmatprep.subr.mxu0 %v149
    %184 = vmatpush1.msra.mxu0 %v148
    %185 = vmatprep.subr.mxu0 0.0
    %186 = vmatpush1.msra.mxu0 0.0
    %187 = vmatprep.subr.mxu0 0.0
    %188 = vmatpush1.msra.mxu0 0.0
    %189 = vmatprep.subr.mxu0 0.0
    %190 = vmatpush1.msra.mxu0 0.0
    %191 = vmatprep.subr.mxu0 0.0
    %192 = vmatpush1.msra.mxu0 0.0
    %193 = vmatprep.subr.mxu0 0.0
    %194 = vmatpush1.msra.mxu0 0.0
    %195 = vmatprep.subr.mxu0 0.0
    %196 = vmatpush1.msra.mxu0 0.0
    %197 = vmatprep.subr.mxu0 0.0
    %198 = vmatpush1.msra.mxu0 0.0
    %199 = vmatprep.subr.mxu0 0.0
    %200 = vmatpush1.msra.mxu0 0.0
    %201 = vmatprep.subr.mxu0 0.0
    %202 = vmatpush1.msra.mxu0 0.0
    %203 = vmatprep.subr.mxu0 0.0
    %204 = vmatpush1.msra.mxu0 0.0
    %205 = vmatprep.subr.mxu0 0.0
    %206 = vmatpush1.msra.mxu0 0.0
    %207 = vmatprep.subr.mxu0 0.0
    %208 = vmatpush1.msra.mxu0 0.0
    %209 = vmatprep.subr.mxu0 0.0
    %210 = vmatpush1.msra.mxu0 0.0
    %211 = vmatprep.subr.mxu0 0.0
    %212 = vmatpush1.msra.mxu0 0.0
    %213 = vmatprep.subr.mxu0 0.0
    %214 = vmatpush1.msra.mxu0 0.0
    %215 = vmatprep.subr.mxu0 0.0
    %216 = vmatpush1.msra.mxu0 0.0
    %217 = vmatprep.subr.mxu0 0.0
    %218 = vmatpush1.msra.mxu0 0.0
    %219 = vmatprep.subr.mxu0 0.0
    %220 = vmatpush1.msra.mxu0 0.0
    %221 = vmatprep.subr.mxu0 0.0
    %222 = vmatpush1.msra.mxu0 0.0
    %223 = vmatprep.subr.mxu0 0.0
    %224 = vmatpush1.msra.mxu0 0.0
    %225 = vmatprep.subr.mxu0 0.0
    %226 = vmatpush1.msra.mxu0 0.0
    %227 = vmatprep.subr.mxu0 0.0
    %228 = vmatpush1.msra.mxu0 0.0
    %229 = vmatprep.subr.mxu0 0.0
    %230 = vmatpush1.msra.mxu0 0.0
    %231 = vmatprep.subr.mxu0 0.0
    %232 = vmatpush1.msra.mxu0 0.0
    %233 = vmatprep.mubr.f32.mxu0 0.0
    %234 = vmatmul.mubr.f32.gmra.mrb[0].mxu0 %v167
    %v235 = vpop.f32.mrb[0].mxu0
    %v236 = vadd.f32 0.0, %v235
    %v237 = vpop.f32.mrb[0].mxu0
    %v238 = vadd.f32 0.0, %v237
    %239 = vdwg.mxu0
    %v240 = vadd.f32 %v163, %v236
    %v241 = vadd.f32 %v164, %v238
    %v242 = vxor.u32 %v240, 2147483648
    %v243 = vmul.f32 %v242, 1.442695
    %v244 = vpow.pop %v243
    %v245 = vadd.f32 %v244, 1.0
    %v246 = vrcp.pop %v245
    %v247 = vmul.f32 1.0, %v246
    %v248 = vtanh.pop %v241
    %v249 = vxor.u32 %v241, 2147483648
    %v250 = vmul.f32 %v249, 1.442695
    %v251 = vpow.pop %v250
    %v252 = vadd.f32 %v251, 1.0
    %v253 = vrcp.pop %v252
    %v254 = vmul.f32 1.0, %v253
    %v255 = vmul.f32 %v247, 0.0
    %v256 = vmul.f32 %v247, %v248
    %258 = vrot.lane.b32.xlu0 %v256, 64
    %v259 = vpop.permute.xlu0 %258
    %v261 = vadd.f32 %v255, %v259
    %v262 = vtanh.pop %v261
    %v263 = vmul.f32 %v254, %v262
    %v264 = vrot.slane %v130, 5
    %v265 = vrot.slane %v132, 5
    %v268 = vsel %vm155, %v130, %v264
    %v269 = vsel %vm156, %v132, %v265
    %271 = vrot.lane.b32.xlu0 %v263, 64
    %v272 = vpop.permute.xlu0 %271
    %v273 = vsel %vm165, %v272, 0
    %275 = vmatprep.subr.mxu0 %v135
    %276 = vmatpush1.msra.mxu0 %v134
    %277 = vmatprep.subr.mxu0 %v137
    %278 = vmatpush1.msra.mxu0 %v136
    %279 = vmatprep.subr.mxu0 %v139
    %280 = vmatpush1.msra.mxu0 %v138
    %281 = vmatprep.subr.mxu0 %v141
    %282 = vmatpush1.msra.mxu0 %v140
    %283 = vmatprep.subr.mxu0 %v143
    %284 = vmatpush1.msra.mxu0 %v142
    %285 = vmatprep.subr.mxu0 %v145
    %286 = vmatpush1.msra.mxu0 %v144
    %287 = vmatprep.subr.mxu0 %v147
    %288 = vmatpush1.msra.mxu0 %v146
    %289 = vmatprep.subr.mxu0 %v149
    %290 = vmatpush1.msra.mxu0 %v148
    %291 = vmatprep.subr.mxu0 0.0
    %292 = vmatpush1.msra.mxu0 0.0
    %293 = vmatprep.subr.mxu0 0.0
    %294 = vmatpush1.msra.mxu0 0.0
    %295 = vmatprep.subr.mxu0 0.0
    %296 = vmatpush1.msra.mxu0 0.0
    %297 = vmatprep.subr.mxu0 0.0
    %298 = vmatpush1.msra.mxu0 0.0
    %299 = vmatprep.subr.mxu0 0.0
    %300 = vmatpush1.msra.mxu0 0.0
    %301 = vmatprep.subr.mxu0 0.0
    %302 = vmatpush1.msra.mxu0 0.0
    %303 = vmatprep.subr.mxu0 0.0
    %304 = vmatpush1.msra.mxu0 0.0
    %305 = vmatprep.subr.mxu0 0.0
    %306 = vmatpush1.msra.mxu0 0.0
    %307 = vmatprep.subr.mxu0 0.0
    %308 = vmatpush1.msra.mxu0 0.0
    %309 = vmatprep.subr.mxu0 0.0
    %310 = vmatpush1.msra.mxu0 0.0
    %311 = vmatprep.subr.mxu0 0.0
    %312 = vmatpush1.msra.mxu0 0.0
    %313 = vmatprep.subr.mxu0 0.0
    %314 = vmatpush1.msra.mxu0 0.0
    %315 = vmatprep.subr.mxu0 0.0
    %316 = vmatpush1.msra.mxu0 0.0
    %317 = vmatprep.subr.mxu0 0.0
    %318 = vmatpush1.msra.mxu0 0.0
    %319 = vmatprep.subr.mxu0 0.0
    %320 = vmatpush1.msra.mxu0 0.0
    %321 = vmatprep.subr.mxu0 0.0
    %322 = vmatpush1.msra.mxu0 0.0
    %323 = vmatprep.subr.mxu0 0.0
    %324 = vmatpush1.msra.mxu0 0.0
    %325 = vmatprep.subr.mxu0 0.0
    %326 = vmatpush1.msra.mxu0 0.0
    %327 = vmatprep.subr.mxu0 0.0
    %328 = vmatpush1.msra.mxu0 0.0
    %329 = vmatprep.subr.mxu0 0.0
    %330 = vmatpush1.msra.mxu0 0.0
    %331 = vmatprep.subr.mxu0 0.0
    %332 = vmatpush1.msra.mxu0 0.0
    %333 = vmatprep.subr.mxu0 0.0
    %334 = vmatpush1.msra.mxu0 0.0
    %335 = vmatprep.subr.mxu0 0.0
    %336 = vmatpush1.msra.mxu0 0.0
    %337 = vmatprep.subr.mxu0 0.0
    %338 = vmatpush1.msra.mxu0 0.0
    %339 = vmatprep.mubr.f32.mxu0 0.0
    %340 = vmatmul.mubr.f32.gmra.mrb[0].mxu0 %v273
    %v341 = vpop.f32.mrb[0].mxu0
    %v342 = vadd.f32 0.0, %v341
    %v343 = vpop.f32.mrb[0].mxu0
    %v344 = vadd.f32 0.0, %v343
    %345 = vdwg.mxu0
    %v348 = vrot.slane %v342, 7
    %v349 = vrot.slane %v344, 7
    %v352 = vadd.f32 %v268, %v348
    %v353 = vadd.f32 %v269, %v349
    %v354 = vxor.u32 %v352, 2147483648
    %v355 = vmul.f32 %v354, 1.442695
    %v356 = vpow.pop %v355
    %v357 = vadd.f32 %v356, 1.0
    %v358 = vrcp.pop %v357
    %v359 = vmul.f32 1.0, %v358
    %v360 = vtanh.pop %v353
    %v361 = vxor.u32 %v353, 2147483648
    %v362 = vmul.f32 %v361, 1.442695
    %v363 = vpow.pop %v362
    %v364 = vadd.f32 %v363, 1.0
    %v365 = vrcp.pop %v364
    %v366 = vmul.f32 1.0, %v365
    %v368 = vrot.slane %v261, 7
    %v370 = vmul.f32 %v359, %v368
    %v371 = vmul.f32 %v359, %v360
    %373 = vrot.lane.b32.xlu0 %v371, 64
    %v374 = vpop.permute.xlu0 %373
    %v376 = vadd.f32 %v370, %v374
    %v377 = vtanh.pop %v376
    %v378 = vmul.f32 %v366, %v377
    %v379 = vrot.slane %v130, 3
    %v380 = vrot.slane %v132, 3
    %v383 = vsel %vm155, %v130, %v379
    %v384 = vsel %vm156, %v132, %v380
    %v386 = vrot.slane %v378, 1
    %387 = vrot.lane.b32.xlu0 %v386, 64
    %v388 = vpop.permute.xlu0 %387
    %v389 = vsel %vm165, %v388, 0
    %391 = vmatprep.subr.mxu0 %v135
    %392 = vmatpush1.msra.mxu0 %v134
    %393 = vmatprep.subr.mxu0 %v137
    %394 = vmatpush1.msra.mxu0 %v136
    %395 = vmatprep.subr.mxu0 %v139
    %396 = vmatpush1.msra.mxu0 %v138
    %397 = vmatprep.subr.mxu0 %v141
    %398 = vmatpush1.msra.mxu0 %v140
    %399 = vmatprep.subr.mxu0 %v143
    %400 = vmatpush1.msra.mxu0 %v142
    %401 = vmatprep.subr.mxu0 %v145
    %402 = vmatpush1.msra.mxu0 %v144
    %403 = vmatprep.subr.mxu0 %v147
    %404 = vmatpush1.msra.mxu0 %v146
    %405 = vmatprep.subr.mxu0 %v149
    %406 = vmatpush1.msra.mxu0 %v148
    %407 = vmatprep.subr.mxu0 0.0
    %408 = vmatpush1.msra.mxu0 0.0
    %409 = vmatprep.subr.mxu0 0.0
    %410 = vmatpush1.msra.mxu0 0.0
    %411 = vmatprep.subr.mxu0 0.0
    %412 = vmatpush1.msra.mxu0 0.0
    %413 = vmatprep.subr.mxu0 0.0
    %414 = vmatpush1.msra.mxu0 0.0
    %415 = vmatprep.subr.mxu0 0.0
    %416 = vmatpush1.msra.mxu0 0.0
    %417 = vmatprep.subr.mxu0 0.0
    %418 = vmatpush1.msra.mxu0 0.0
    %419 = vmatprep.subr.mxu0 0.0
    %420 = vmatpush1.msra.mxu0 0.0
    %421 = vmatprep.subr.mxu0 0.0
    %422 = vmatpush1.msra.mxu0 0.0
    %423 = vmatprep.subr.mxu0 0.0
    %424 = vmatpush1.msra.mxu0 0.0
    %425 = vmatprep.subr.mxu0 0.0
    %426 = vmatpush1.msra.mxu0 0.0
    %427 = vmatprep.subr.mxu0 0.0
    %428 = vmatpush1.msra.mxu0 0.0
    %429 = vmatprep.subr.mxu0 0.0
    %430 = vmatpush1.msra.mxu0 0.0
    %431 = vmatprep.subr.mxu0 0.0
    %432 = vmatpush1.msra.mxu0 0.0
    %433 = vmatprep.subr.mxu0 0.0
    %434 = vmatpush1.msra.mxu0 0.0
    %435 = vmatprep.subr.mxu0 0.0
    %436 = vmatpush1.msra.mxu0 0.0
    %437 = vmatprep.subr.mxu0 0.0
    %438 = vmatpush1.msra.mxu0 0.0
    %439 = vmatprep.subr.mxu0 0.0
    %440 = vmatpush1.msra.mxu0 0.0
    %441 = vmatprep.subr.mxu0 0.0
    %442 = vmatpush1.msra.mxu0 0.0
    %443 = vmatprep.subr.mxu0 0.0
    %444 = vmatpush1.msra.mxu0 0.0
    %445 = vmatprep.subr.mxu0 0.0
    %446 = vmatpush1.msra.mxu0 0.0
    %447 = vmatprep.subr.mxu0 0.0
    %448 = vmatpush1.msra.mxu0 0.0
    %449 = vmatprep.subr.mxu0 0.0
    %450 = vmatpush1.msra.mxu0 0.0
    %451 = vmatprep.subr.mxu0 0.0
    %452 = vmatpush1.msra.mxu0 0.0
    %453 = vmatprep.subr.mxu0 0.0
    %454 = vmatpush1.msra.mxu0 0.0
    %455 = vmatprep.mubr.f32.mxu0 0.0
    %456 = vmatmul.mubr.f32.gmra.mrb[0].mxu0 %v389
    %v457 = vpop.f32.mrb[0].mxu0
    %v458 = vadd.f32 0.0, %v457
    %v459 = vpop.f32.mrb[0].mxu0
    %v460 = vadd.f32 0.0, %v459
    %461 = vdwg.mxu0
    %v464 = vrot.slane %v458, 6
    %v465 = vrot.slane %v460, 6
    %v468 = vadd.f32 %v383, %v464
    %v469 = vadd.f32 %v384, %v465
    %v470 = vxor.u32 %v468, 2147483648
    %v471 = vmul.f32 %v470, 1.442695
    %v472 = vpow.pop %v471
    %v473 = vadd.f32 %v472, 1.0
    %v474 = vrcp.pop %v473
    %v475 = vmul.f32 1.0, %v474
    %v476 = vtanh.pop %v469
    %v477 = vxor.u32 %v469, 2147483648
    %v478 = vmul.f32 %v477, 1.442695
    %v479 = vpow.pop %v478
    %v480 = vadd.f32 %v479, 1.0
    %v481 = vrcp.pop %v480
    %v482 = vmul.f32 1.0, %v481
    %v484 = vrot.slane %v376, 7
    %v486 = vmul.f32 %v475, %v484
    %v487 = vmul.f32 %v475, %v476
    %489 = vrot.lane.b32.xlu0 %v487, 64
    %v490 = vpop.permute.xlu0 %489
    %v492 = vadd.f32 %v486, %v490
    %v493 = vtanh.pop %v492
    %v494 = vmul.f32 %v482, %v493
    %v495 = vrot.slane %v130, 1
    %v496 = vrot.slane %v132, 1
    %v499 = vsel %vm155, %v130, %v495
    %v500 = vsel %vm156, %v132, %v496
    %v502 = vrot.slane %v494, 2
    %503 = vrot.lane.b32.xlu0 %v502, 64
    %v504 = vpop.permute.xlu0 %503
    %v505 = vsel %vm165, %v504, 0
    %507 = vmatprep.subr.mxu0 %v135
    %508 = vmatpush1.msra.mxu0 %v134
    %509 = vmatprep.subr.mxu0 %v137
    %510 = vmatpush1.msra.mxu0 %v136
    %511 = vmatprep.subr.mxu0 %v139
    %512 = vmatpush1.msra.mxu0 %v138
    %513 = vmatprep.subr.mxu0 %v141
    %514 = vmatpush1.msra.mxu0 %v140
    %515 = vmatprep.subr.mxu0 %v143
    %516 = vmatpush1.msra.mxu0 %v142
    %517 = vmatprep.subr.mxu0 %v145
    %518 = vmatpush1.msra.mxu0 %v144
    %519 = vmatprep.subr.mxu0 %v147
    %520 = vmatpush1.msra.mxu0 %v146
    %521 = vmatprep.subr.mxu0 %v149
    %522 = vmatpush1.msra.mxu0 %v148
    %523 = vmatprep.subr.mxu0 0.0
    %524 = vmatpush1.msra.mxu0 0.0
    %525 = vmatprep.subr.mxu0 0.0
    %526 = vmatpush1.msra.mxu0 0.0
    %527 = vmatprep.subr.mxu0 0.0
    %528 = vmatpush1.msra.mxu0 0.0
    %529 = vmatprep.subr.mxu0 0.0
    %530 = vmatpush1.msra.mxu0 0.0
    %531 = vmatprep.subr.mxu0 0.0
    %532 = vmatpush1.msra.mxu0 0.0
    %533 = vmatprep.subr.mxu0 0.0
    %534 = vmatpush1.msra.mxu0 0.0
    %535 = vmatprep.subr.mxu0 0.0
    %536 = vmatpush1.msra.mxu0 0.0
    %537 = vmatprep.subr.mxu0 0.0
    %538 = vmatpush1.msra.mxu0 0.0
    %539 = vmatprep.subr.mxu0 0.0
    %540 = vmatpush1.msra.mxu0 0.0
    %541 = vmatprep.subr.mxu0 0.0
    %542 = vmatpush1.msra.mxu0 0.0
    %543 = vmatprep.subr.mxu0 0.0
    %544 = vmatpush1.msra.mxu0 0.0
    %545 = vmatprep.subr.mxu0 0.0
    %546 = vmatpush1.msra.mxu0 0.0
    %547 = vmatprep.subr.mxu0 0.0
    %548 = vmatpush1.msra.mxu0 0.0
    %549 = vmatprep.subr.mxu0 0.0
    %550 = vmatpush1.msra.mxu0 0.0
    %551 = vmatprep.subr.mxu0 0.0
    %552 = vmatpush1.msra.mxu0 0.0
    %553 = vmatprep.subr.mxu0 0.0
    %554 = vmatpush1.msra.mxu0 0.0
    %555 = vmatprep.subr.mxu0 0.0
    %556 = vmatpush1.msra.mxu0 0.0
    %557 = vmatprep.subr.mxu0 0.0
    %558 = vmatpush1.msra.mxu0 0.0
    %559 = vmatprep.subr.mxu0 0.0
    %560 = vmatpush1.msra.mxu0 0.0
    %561 = vmatprep.subr.mxu0 0.0
    %562 = vmatpush1.msra.mxu0 0.0
    %563 = vmatprep.subr.mxu0 0.0
    %564 = vmatpush1.msra.mxu0 0.0
    %565 = vmatprep.subr.mxu0 0.0
    %566 = vmatpush1.msra.mxu0 0.0
    %567 = vmatprep.subr.mxu0 0.0
    %568 = vmatpush1.msra.mxu0 0.0
    %569 = vmatprep.subr.mxu0 0.0
    %570 = vmatpush1.msra.mxu0 0.0
    %571 = vmatprep.mubr.f32.mxu0 0.0
    %572 = vmatmul.mubr.f32.gmra.mrb[0].mxu0 %v505
    %v573 = vpop.f32.mrb[0].mxu0
    %v574 = vadd.f32 0.0, %v573
    %v575 = vpop.f32.mrb[0].mxu0
    %v576 = vadd.f32 0.0, %v575
    %577 = vdwg.mxu0
    %v580 = vrot.slane %v574, 5
    %v581 = vrot.slane %v576, 5
    %v584 = vadd.f32 %v499, %v580
    %v585 = vadd.f32 %v500, %v581
    %v586 = vxor.u32 %v584, 2147483648
    %v587 = vmul.f32 %v586, 1.442695
    %v588 = vpow.pop %v587
    %v589 = vadd.f32 %v588, 1.0
    %v590 = vrcp.pop %v589
    %v591 = vmul.f32 1.0, %v590
    %v592 = vtanh.pop %v585
    %v593 = vxor.u32 %v585, 2147483648
    %v594 = vmul.f32 %v593, 1.442695
    %v595 = vpow.pop %v594
    %v596 = vadd.f32 %v595, 1.0
    %v597 = vrcp.pop %v596
    %v598 = vmul.f32 1.0, %v597
    %v600 = vrot.slane %v492, 7
    %v602 = vmul.f32 %v591, %v600
    %v603 = vmul.f32 %v591, %v592
    %605 = vrot.lane.b32.xlu0 %v603, 64
    %v606 = vpop.permute.xlu0 %605
    %v608 = vadd.f32 %v602, %v606
    %v609 = vtanh.pop %v608
    %v610 = vmul.f32 %v598, %v609
    %v612 = vrot.slane %v610, 3
    %613 = vrot.lane.b32.xlu0 %v612, 64
    %v614 = vpop.permute.xlu0 %613
    %v615 = vsel %vm165, %v614, 0
    %617 = vmatprep.subr.mxu0 %v135
    %618 = vmatpush1.msra.mxu0 %v134
    %619 = vmatprep.subr.mxu0 %v137
    %620 = vmatpush1.msra.mxu0 %v136
    %621 = vmatprep.subr.mxu0 %v139
    %622 = vmatpush1.msra.mxu0 %v138
    %623 = vmatprep.subr.mxu0 %v141
    %624 = vmatpush1.msra.mxu0 %v140
    %625 = vmatprep.subr.mxu0 %v143
    %626 = vmatpush1.msra.mxu0 %v142
    %627 = vmatprep.subr.mxu0 %v145
    %628 = vmatpush1.msra.mxu0 %v144
    %629 = vmatprep.subr.mxu0 %v147
    %630 = vmatpush1.msra.mxu0 %v146
    %631 = vmatprep.subr.mxu0 %v149
    %632 = vmatpush1.msra.mxu0 %v148
    %633 = vmatprep.subr.mxu0 0.0
    %634 = vmatpush1.msra.mxu0 0.0
    %635 = vmatprep.subr.mxu0 0.0
    %636 = vmatpush1.msra.mxu0 0.0
    %637 = vmatprep.subr.mxu0 0.0
    %638 = vmatpush1.msra.mxu0 0.0
    %639 = vmatprep.subr.mxu0 0.0
    %640 = vmatpush1.msra.mxu0 0.0
    %641 = vmatprep.subr.mxu0 0.0
    %642 = vmatpush1.msra.mxu0 0.0
    %643 = vmatprep.subr.mxu0 0.0
    %644 = vmatpush1.msra.mxu0 0.0
    %645 = vmatprep.subr.mxu0 0.0
    %646 = vmatpush1.msra.mxu0 0.0
    %647 = vmatprep.subr.mxu0 0.0
    %648 = vmatpush1.msra.mxu0 0.0
    %649 = vmatprep.subr.mxu0 0.0
    %650 = vmatpush1.msra.mxu0 0.0
    %651 = vmatprep.subr.mxu0 0.0
    %652 = vmatpush1.msra.mxu0 0.0
    %653 = vmatprep.subr.mxu0 0.0
    %654 = vmatpush1.msra.mxu0 0.0
    %655 = vmatprep.subr.mxu0 0.0
    %656 = vmatpush1.msra.mxu0 0.0
    %657 = vmatprep.subr.mxu0 0.0
    %658 = vmatpush1.msra.mxu0 0.0
    %659 = vmatprep.subr.mxu0 0.0
    %660 = vmatpush1.msra.mxu0 0.0
    %661 = vmatprep.subr.mxu0 0.0
    %662 = vmatpush1.msra.mxu0 0.0
    %663 = vmatprep.subr.mxu0 0.0
    %664 = vmatpush1.msra.mxu0 0.0
    %665 = vmatprep.subr.mxu0 0.0
    %666 = vmatpush1.msra.mxu0 0.0
    %667 = vmatprep.subr.mxu0 0.0
    %668 = vmatpush1.msra.mxu0 0.0
    %669 = vmatprep.subr.mxu0 0.0
    %670 = vmatpush1.msra.mxu0 0.0
    %671 = vmatprep.subr.mxu0 0.0
    %672 = vmatpush1.msra.mxu0 0.0
    %673 = vmatprep.subr.mxu0 0.0
    %674 = vmatpush1.msra.mxu0 0.0
    %675 = vmatprep.subr.mxu0 0.0
    %676 = vmatpush1.msra.mxu0 0.0
    %677 = vmatprep.subr.mxu0 0.0
    %678 = vmatpush1.msra.mxu0 0.0
    %679 = vmatprep.subr.mxu0 0.0
    %680 = vmatpush1.msra.mxu0 0.0
    %681 = vmatprep.mubr.f32.mxu0 0.0
    %682 = vmatmul.mubr.f32.gmra.mrb[0].mxu0 %v615
    %v683 = vpop.f32.mrb[0].mxu0
    %v684 = vadd.f32 0.0, %v683
    %v685 = vpop.f32.mrb[0].mxu0
    %v686 = vadd.f32 0.0, %v685
    %687 = vdwg.mxu0
    %v690 = vrot.slane %v684, 4
    %v691 = vrot.slane %v686, 4
    %v694 = vadd.f32 %v163, %v690
    %v695 = vadd.f32 %v164, %v691
    %v696 = vxor.u32 %v694, 2147483648
    %v697 = vmul.f32 %v696, 1.442695
    %v698 = vpow.pop %v697
    %v699 = vadd.f32 %v698, 1.0
    %v700 = vrcp.pop %v699
    %v701 = vmul.f32 1.0, %v700
    %v702 = vtanh.pop %v695
    %v703 = vxor.u32 %v695, 2147483648
    %v704 = vmul.f32 %v703, 1.442695
    %v705 = vpow.pop %v704
    %v706 = vadd.f32 %v705, 1.0
    %v707 = vrcp.pop %v706
    %v708 = vmul.f32 1.0, %v707
    %v710 = vrot.slane %v608, 7
    %v712 = vmul.f32 %v701, %v710
    %v713 = vmul.f32 %v701, %v702
    %715 = vrot.lane.b32.xlu0 %v713, 64
    %v716 = vpop.permute.xlu0 %715
    %v718 = vadd.f32 %v712, %v716
    %v719 = vtanh.pop %v718
    %v720 = vmul.f32 %v708, %v719
    %v722 = vrot.slane %v720, 4
    %723 = vrot.lane.b32.xlu0 %v722, 64
    %v724 = vpop.permute.xlu0 %723
    %v725 = vsel %vm165, %v724, 0
    %727 = vmatprep.subr.mxu0 %v135
    %728 = vmatpush1.msra.mxu0 %v134
    %729 = vmatprep.subr.mxu0 %v137
    %730 = vmatpush1.msra.mxu0 %v136
    %731 = vmatprep.subr.mxu0 %v139
    %732 = vmatpush1.msra.mxu0 %v138
    %733 = vmatprep.subr.mxu0 %v141
    %734 = vmatpush1.msra.mxu0 %v140
    %735 = vmatprep.subr.mxu0 %v143
    %736 = vmatpush1.msra.mxu0 %v142
    %737 = vmatprep.subr.mxu0 %v145
    %738 = vmatpush1.msra.mxu0 %v144
    %739 = vmatprep.subr.mxu0 %v147
    %740 = vmatpush1.msra.mxu0 %v146
    %741 = vmatprep.subr.mxu0 %v149
    %742 = vmatpush1.msra.mxu0 %v148
    %743 = vmatprep.subr.mxu0 0.0
    %744 = vmatpush1.msra.mxu0 0.0
    %745 = vmatprep.subr.mxu0 0.0
    %746 = vmatpush1.msra.mxu0 0.0
    %747 = vmatprep.subr.mxu0 0.0
    %748 = vmatpush1.msra.mxu0 0.0
    %749 = vmatprep.subr.mxu0 0.0
    %750 = vmatpush1.msra.mxu0 0.0
    %751 = vmatprep.subr.mxu0 0.0
    %752 = vmatpush1.msra.mxu0 0.0
    %753 = vmatprep.subr.mxu0 0.0
    %754 = vmatpush1.msra.mxu0 0.0
    %755 = vmatprep.subr.mxu0 0.0
    %756 = vmatpush1.msra.mxu0 0.0
    %757 = vmatprep.subr.mxu0 0.0
    %758 = vmatpush1.msra.mxu0 0.0
    %759 = vmatprep.subr.mxu0 0.0
    %760 = vmatpush1.msra.mxu0 0.0
    %761 = vmatprep.subr.mxu0 0.0
    %762 = vmatpush1.msra.mxu0 0.0
    %763 = vmatprep.subr.mxu0 0.0
    %764 = vmatpush1.msra.mxu0 0.0
    %765 = vmatprep.subr.mxu0 0.0
    %766 = vmatpush1.msra.mxu0 0.0
    %767 = vmatprep.subr.mxu0 0.0
    %768 = vmatpush1.msra.mxu0 0.0
    %769 = vmatprep.subr.mxu0 0.0
    %770 = vmatpush1.msra.mxu0 0.0
    %771 = vmatprep.subr.mxu0 0.0
    %772 = vmatpush1.msra.mxu0 0.0
    %773 = vmatprep.subr.mxu0 0.0
    %774 = vmatpush1.msra.mxu0 0.0
    %775 = vmatprep.subr.mxu0 0.0
    %776 = vmatpush1.msra.mxu0 0.0
    %777 = vmatprep.subr.mxu0 0.0
    %778 = vmatpush1.msra.mxu0 0.0
    %779 = vmatprep.subr.mxu0 0.0
    %780 = vmatpush1.msra.mxu0 0.0
    %781 = vmatprep.subr.mxu0 0.0
    %782 = vmatpush1.msra.mxu0 0.0
    %783 = vmatprep.subr.mxu0 0.0
    %784 = vmatpush1.msra.mxu0 0.0
    %785 = vmatprep.subr.mxu0 0.0
    %786 = vmatpush1.msra.mxu0 0.0
    %787 = vmatprep.subr.mxu0 0.0
    %788 = vmatpush1.msra.mxu0 0.0
    %789 = vmatprep.subr.mxu0 0.0
    %790 = vmatpush1.msra.mxu0 0.0
    %791 = vmatprep.mubr.f32.mxu0 0.0
    %792 = vmatmul.mubr.f32.gmra.mrb[0].mxu0 %v725
    %v793 = vpop.f32.mrb[0].mxu0
    %v794 = vadd.f32 0.0, %v793
    %v795 = vpop.f32.mrb[0].mxu0
    %v796 = vadd.f32 0.0, %v795
    %797 = vdwg.mxu0
    %v800 = vrot.slane %v794, 3
    %v801 = vrot.slane %v796, 3
    %v804 = vadd.f32 %v268, %v800
    %v805 = vadd.f32 %v269, %v801
    %v806 = vxor.u32 %v804, 2147483648
    %v807 = vmul.f32 %v806, 1.442695
    %v808 = vpow.pop %v807
    %v809 = vadd.f32 %v808, 1.0
    %v810 = vrcp.pop %v809
    %v811 = vmul.f32 1.0, %v810
    %v812 = vtanh.pop %v805
    %v813 = vxor.u32 %v805, 2147483648
    %v814 = vmul.f32 %v813, 1.442695
    %v815 = vpow.pop %v814
    %v816 = vadd.f32 %v815, 1.0
    %v817 = vrcp.pop %v816
    %v818 = vmul.f32 1.0, %v817
    %v820 = vrot.slane %v718, 7
    %v822 = vmul.f32 %v811, %v820
    %v823 = vmul.f32 %v811, %v812
    %825 = vrot.lane.b32.xlu0 %v823, 64
    %v826 = vpop.permute.xlu0 %825
    %v828 = vadd.f32 %v822, %v826
    %v829 = vtanh.pop %v828
    %v830 = vmul.f32 %v818, %v829
    %v832 = vrot.slane %v830, 5
    %833 = vrot.lane.b32.xlu0 %v832, 64
    %v834 = vpop.permute.xlu0 %833
    %v835 = vsel %vm165, %v834, 0
    %837 = vmatprep.subr.mxu0 %v135
    %838 = vmatpush1.msra.mxu0 %v134
    %839 = vmatprep.subr.mxu0 %v137
    %840 = vmatpush1.msra.mxu0 %v136
    %841 = vmatprep.subr.mxu0 %v139
    %842 = vmatpush1.msra.mxu0 %v138
    %843 = vmatprep.subr.mxu0 %v141
    %844 = vmatpush1.msra.mxu0 %v140
    %845 = vmatprep.subr.mxu0 %v143
    %846 = vmatpush1.msra.mxu0 %v142
    %847 = vmatprep.subr.mxu0 %v145
    %848 = vmatpush1.msra.mxu0 %v144
    %849 = vmatprep.subr.mxu0 %v147
    %850 = vmatpush1.msra.mxu0 %v146
    %851 = vmatprep.subr.mxu0 %v149
    %852 = vmatpush1.msra.mxu0 %v148
    %853 = vmatprep.subr.mxu0 0.0
    %854 = vmatpush1.msra.mxu0 0.0
    %855 = vmatprep.subr.mxu0 0.0
    %856 = vmatpush1.msra.mxu0 0.0
    %857 = vmatprep.subr.mxu0 0.0
    %858 = vmatpush1.msra.mxu0 0.0
    %859 = vmatprep.subr.mxu0 0.0
    %860 = vmatpush1.msra.mxu0 0.0
    %861 = vmatprep.subr.mxu0 0.0
    %862 = vmatpush1.msra.mxu0 0.0
    %863 = vmatprep.subr.mxu0 0.0
    %864 = vmatpush1.msra.mxu0 0.0
    %865 = vmatprep.subr.mxu0 0.0
    %866 = vmatpush1.msra.mxu0 0.0
    %867 = vmatprep.subr.mxu0 0.0
    %868 = vmatpush1.msra.mxu0 0.0
    %869 = vmatprep.subr.mxu0 0.0
    %870 = vmatpush1.msra.mxu0 0.0
    %871 = vmatprep.subr.mxu0 0.0
    %872 = vmatpush1.msra.mxu0 0.0
    %873 = vmatprep.subr.mxu0 0.0
    %874 = vmatpush1.msra.mxu0 0.0
    %875 = vmatprep.subr.mxu0 0.0
    %876 = vmatpush1.msra.mxu0 0.0
    %877 = vmatprep.subr.mxu0 0.0
    %878 = vmatpush1.msra.mxu0 0.0
    %879 = vmatprep.subr.mxu0 0.0
    %880 = vmatpush1.msra.mxu0 0.0
    %881 = vmatprep.subr.mxu0 0.0
    %882 = vmatpush1.msra.mxu0 0.0
    %883 = vmatprep.subr.mxu0 0.0
    %884 = vmatpush1.msra.mxu0 0.0
    %885 = vmatprep.subr.mxu0 0.0
    %886 = vmatpush1.msra.mxu0 0.0
    %887 = vmatprep.subr.mxu0 0.0
    %888 = vmatpush1.msra.mxu0 0.0
    %889 = vmatprep.subr.mxu0 0.0
    %890 = vmatpush1.msra.mxu0 0.0
    %891 = vmatprep.subr.mxu0 0.0
    %892 = vmatpush1.msra.mxu0 0.0
    %893 = vmatprep.subr.mxu0 0.0
    %894 = vmatpush1.msra.mxu0 0.0
    %895 = vmatprep.subr.mxu0 0.0
    %896 = vmatpush1.msra.mxu0 0.0
    %897 = vmatprep.subr.mxu0 0.0
    %898 = vmatpush1.msra.mxu0 0.0
    %899 = vmatprep.subr.mxu0 0.0
    %900 = vmatpush1.msra.mxu0 0.0
    %901 = vmatprep.mubr.f32.mxu0 0.0
    %902 = vmatmul.mubr.f32.gmra.mrb[0].mxu0 %v835
    %v903 = vpop.f32.mrb[0].mxu0
    %v904 = vadd.f32 0.0, %v903
    %v905 = vpop.f32.mrb[0].mxu0
    %v906 = vadd.f32 0.0, %v905
    %907 = vdwg.mxu0
    %v910 = vrot.slane %v904, 2
    %v911 = vrot.slane %v906, 2
    %v914 = vadd.f32 %v383, %v910
    %v915 = vadd.f32 %v384, %v911
    %v916 = vxor.u32 %v914, 2147483648
    %v917 = vmul.f32 %v916, 1.442695
    %v918 = vpow.pop %v917
    %v919 = vadd.f32 %v918, 1.0
    %v920 = vrcp.pop %v919
    %v921 = vmul.f32 1.0, %v920
    %v922 = vtanh.pop %v915
    %v923 = vxor.u32 %v915, 2147483648
    %v924 = vmul.f32 %v923, 1.442695
    %v925 = vpow.pop %v924
    %v926 = vadd.f32 %v925, 1.0
    %v927 = vrcp.pop %v926
    %v928 = vmul.f32 1.0, %v927
    %v930 = vrot.slane %v828, 7
    %v932 = vmul.f32 %v921, %v930
    %v933 = vmul.f32 %v921, %v922
    %935 = vrot.lane.b32.xlu0 %v933, 64
    %v936 = vpop.permute.xlu0 %935
    %v938 = vadd.f32 %v932, %v936
    %v939 = vtanh.pop %v938
    %v940 = vmul.f32 %v928, %v939
    %v942 = vrot.slane %v940, 6
    %943 = vrot.lane.b32.xlu0 %v942, 64
    %v944 = vpop.permute.xlu0 %943
    %v945 = vsel %vm165, %v944, 0
    %947 = vmatprep.subr.mxu0 %v135
    %948 = vmatpush1.msra.mxu0 %v134
    %949 = vmatprep.subr.mxu0 %v137
    %950 = vmatpush1.msra.mxu0 %v136
    %951 = vmatprep.subr.mxu0 %v139
    %952 = vmatpush1.msra.mxu0 %v138
    %953 = vmatprep.subr.mxu0 %v141
    %954 = vmatpush1.msra.mxu0 %v140
    %955 = vmatprep.subr.mxu0 %v143
    %956 = vmatpush1.msra.mxu0 %v142
    %957 = vmatprep.subr.mxu0 %v145
    %958 = vmatpush1.msra.mxu0 %v144
    %959 = vmatprep.subr.mxu0 %v147
    %960 = vmatpush1.msra.mxu0 %v146
    %961 = vmatprep.subr.mxu0 %v149
    %962 = vmatpush1.msra.mxu0 %v148
    %963 = vmatprep.subr.mxu0 0.0
    %964 = vmatpush1.msra.mxu0 0.0
    %965 = vmatprep.subr.mxu0 0.0
    %966 = vmatpush1.msra.mxu0 0.0
    %967 = vmatprep.subr.mxu0 0.0
    %968 = vmatpush1.msra.mxu0 0.0
    %969 = vmatprep.subr.mxu0 0.0
    %970 = vmatpush1.msra.mxu0 0.0
    %971 = vmatprep.subr.mxu0 0.0
    %972 = vmatpush1.msra.mxu0 0.0
    %973 = vmatprep.subr.mxu0 0.0
    %974 = vmatpush1.msra.mxu0 0.0
    %975 = vmatprep.subr.mxu0 0.0
    %976 = vmatpush1.msra.mxu0 0.0
    %977 = vmatprep.subr.mxu0 0.0
    %978 = vmatpush1.msra.mxu0 0.0
    %979 = vmatprep.subr.mxu0 0.0
    %980 = vmatpush1.msra.mxu0 0.0
    %981 = vmatprep.subr.mxu0 0.0
    %982 = vmatpush1.msra.mxu0 0.0
    %983 = vmatprep.subr.mxu0 0.0
    %984 = vmatpush1.msra.mxu0 0.0
    %985 = vmatprep.subr.mxu0 0.0
    %986 = vmatpush1.msra.mxu0 0.0
    %987 = vmatprep.subr.mxu0 0.0
    %988 = vmatpush1.msra.mxu0 0.0
    %989 = vmatprep.subr.mxu0 0.0
    %990 = vmatpush1.msra.mxu0 0.0
    %991 = vmatprep.subr.mxu0 0.0
    %992 = vmatpush1.msra.mxu0 0.0
    %993 = vmatprep.subr.mxu0 0.0
    %994 = vmatpush1.msra.mxu0 0.0
    %995 = vmatprep.subr.mxu0 0.0
    %996 = vmatpush1.msra.mxu0 0.0
    %997 = vmatprep.subr.mxu0 0.0
    %998 = vmatpush1.msra.mxu0 0.0
    %999 = vmatprep.subr.mxu0 0.0
    %1000 = vmatpush1.msra.mxu0 0.0
    %1001 = vmatprep.subr.mxu0 0.0
    %1002 = vmatpush1.msra.mxu0 0.0
    %1003 = vmatprep.subr.mxu0 0.0
    %1004 = vmatpush1.msra.mxu0 0.0
    %1005 = vmatprep.subr.mxu0 0.0
    %1006 = vmatpush1.msra.mxu0 0.0
    %1007 = vmatprep.subr.mxu0 0.0
    %1008 = vmatpush1.msra.mxu0 0.0
    %1009 = vmatprep.subr.mxu0 0.0
    %1010 = vmatpush1.msra.mxu0 0.0
    %1011 = vmatprep.mubr.f32.mxu0 0.0
    %1012 = vmatmul.mubr.f32.gmra.mrb[0].mxu0 %v945
    %v1013 = vpop.f32.mrb[0].mxu0
    %v1014 = vadd.f32 0.0, %v1013
    %v1015 = vpop.f32.mrb[0].mxu0
    %v1016 = vadd.f32 0.0, %v1015
    %1017 = vdwg.mxu0
    %v1020 = vrot.slane %v1014, 1
    %v1021 = vrot.slane %v1016, 1
    %v1024 = vadd.f32 %v499, %v1020
    %v1025 = vadd.f32 %v500, %v1021
    %v1026 = vxor.u32 %v1024, 2147483648
    %v1027 = vmul.f32 %v1026, 1.442695
    %v1028 = vpow.pop %v1027
    %v1029 = vadd.f32 %v1028, 1.0
    %v1030 = vrcp.pop %v1029
    %v1031 = vmul.f32 1.0, %v1030
    %v1032 = vtanh.pop %v1025
    %v1033 = vxor.u32 %v1025, 2147483648
    %v1034 = vmul.f32 %v1033, 1.442695
    %v1035 = vpow.pop %v1034
    %v1036 = vadd.f32 %v1035, 1.0
    %v1037 = vrcp.pop %v1036
    %v1038 = vmul.f32 1.0, %v1037
    %v1040 = vrot.slane %v938, 7
    %v1042 = vmul.f32 %v1031, %v1040
    %v1043 = vmul.f32 %v1031, %v1032
    %1045 = vrot.lane.b32.xlu0 %v1043, 64
    %v1046 = vpop.permute.xlu0 %1045
    %v1048 = vadd.f32 %v1042, %v1046
    %v1049 = vtanh.pop %v1048
    %v1050 = vmul.f32 %v1038, %v1049
    %v1051 = vld [vmem:[%s4] sm:$0xff]
    %v1052 = vld [vmem:[%s4 + $0x8] sm:$0xff]
    %v1053 = vld [vmem:[%s4 + $0x10] sm:$0xff]
    %v1054 = vld [vmem:[%s4 + $0x18] sm:$0xff]
    %v1055 = vld [vmem:[%s4 + $0x20] sm:$0xff]
    %v1056 = vld [vmem:[%s4 + $0x28] sm:$0xff]
    %v1057 = vld [vmem:[%s4 + $0x30] sm:$0xff]
    %v1058 = vld [vmem:[%s4 + $0x38] sm:$0xff]
    %v1059 = vld [vmem:[%s5] sm:$0x1]
    %v1061 = vrot.slane %v1050, 7
    %1062 = vrot.lane.b32.xlu0 %v1061, 64
    %v1063 = vpop.permute.xlu0 %1062
    %v1064 = vsel %vm165, %v1063, 0
    %1066 = vmatprep.subr.mxu0 0.0
    %1067 = vmatpush1.msra.mxu0 %v1051
    %1068 = vmatprep.subr.mxu0 0.0
    %1069 = vmatpush1.msra.mxu0 %v1052
    %1070 = vmatprep.subr.mxu0 0.0
    %1071 = vmatpush1.msra.mxu0 %v1053
    %1072 = vmatprep.subr.mxu0 0.0
    %1073 = vmatpush1.msra.mxu0 %v1054
    %1074 = vmatprep.subr.mxu0 0.0
    %1075 = vmatpush1.msra.mxu0 %v1055
    %1076 = vmatprep.subr.mxu0 0.0
    %1077 = vmatpush1.msra.mxu0 %v1056
    %1078 = vmatprep.subr.mxu0 0.0
    %1079 = vmatpush1.msra.mxu0 %v1057
    %1080 = vmatprep.subr.mxu0 0.0
    %1081 = vmatpush1.msra.mxu0 %v1058
    %1082 = vmatprep.subr.mxu0 0.0
    %1083 = vmatpush1.msra.mxu0 0.0
    %1084 = vmatprep.subr.mxu0 0.0
    %1085 = vmatpush1.msra.mxu0 0.0
    %1086 = vmatprep.subr.mxu0 0.0
    %1087 = vmatpush1.msra.mxu0 0.0
    %1088 = vmatprep.subr.mxu0 0.0
    %1089 = vmatpush1.msra.mxu0 0.0
    %1090 = vmatprep.subr.mxu0 0.0
    %1091 = vmatpush1.msra.mxu0 0.0
    %1092 = vmatprep.subr.mxu0 0.0
    %1093 = vmatpush1.msra.mxu0 0.0
    %1094 = vmatprep.subr.mxu0 0.0
    %1095 = vmatpush1.msra.mxu0 0.0
    %1096 = vmatprep.subr.mxu0 0.0
    %1097 = vmatpush1.msra.mxu0 0.0
    %1098 = vmatprep.subr.mxu0 0.0
    %1099 = vmatpush1.msra.mxu0 0.0
    %1100 = vmatprep.subr.mxu0 0.0
    %1101 = vmatpush1.msra.mxu0 0.0
    %1102 = vmatprep.subr.mxu0 0.0
    %1103 = vmatpush1.msra.mxu0 0.0
    %1104 = vmatprep.subr.mxu0 0.0
    %1105 = vmatpush1.msra.mxu0 0.0
    %1106 = vmatprep.subr.mxu0 0.0
    %1107 = vmatpush1.msra.mxu0 0.0
    %1108 = vmatprep.subr.mxu0 0.0
    %1109 = vmatpush1.msra.mxu0 0.0
    %1110 = vmatprep.subr.mxu0 0.0
    %1111 = vmatpush1.msra.mxu0 0.0
    %1112 = vmatprep.subr.mxu0 0.0
    %1113 = vmatpush1.msra.mxu0 0.0
    %1114 = vmatprep.subr.mxu0 0.0
    %1115 = vmatpush1.msra.mxu0 0.0
    %1116 = vmatprep.subr.mxu0 0.0
    %1117 = vmatpush1.msra.mxu0 0.0
    %1118 = vmatprep.subr.mxu0 0.0
    %1119 = vmatpush1.msra.mxu0 0.0
    %1120 = vmatprep.subr.mxu0 0.0
    %1121 = vmatpush1.msra.mxu0 0.0
    %1122 = vmatprep.subr.mxu0 0.0
    %1123 = vmatpush1.msra.mxu0 0.0
    %1124 = vmatprep.subr.mxu0 0.0
    %1125 = vmatpush1.msra.mxu0 0.0
    %1126 = vmatprep.subr.mxu0 0.0
    %1127 = vmatpush1.msra.mxu0 0.0
    %1128 = vmatprep.subr.mxu0 0.0
    %1129 = vmatpush1.msra.mxu0 0.0
    %1130 = vmatprep.mubr.f32.mxu0 0.0
    %1131 = vmatmul.mubr.f32.gmra.mrb[0].mxu0 %v1064
    %v1132 = vpop.f32.mrb[0].mxu0
    %v1133 = vadd.f32 %v1059, %v1132
    %v1134 = vpop.f32.mrb[0].mxu0
    %1135 = vdwg.mxu0
    %vm1136 = vcmask 57344
    %1137 = vst.msk [vmem:[#allocation5] sm:$0x1] %vm1136, %v1133
    // Predicated region
    $region30: #{tpu_custom_call.1} parent=1 // pred_check
      _
    $region31: #{tpu_custom_call.1} parent=1 // pred_check_branch
      %1139 = sbr.rel (0) target = $region33
    $region32: #{tpu_custom_call.1} parent=1 // pred_region
      %s1141 = ssub.s32 16, 16
      %1142 = vsyncadd [#allocation4], %s1141
      %s1144 = sshll.u32 [#allocation5], 4
      %s1145 = int_to_ptr.vmem [resolvable:$true] %s1144
      %1147 = dma.vmem_to_hbm [thread:$0]  %s1145, 16, %s6, [#allocation4]
    $region33: #{tpu_custom_call.1} parent=1 // pred_fallthru
      _
    // Predicated region
    $region34: #{tpu_custom_call.1} parent=1 // pred_check
      _
    $region35: #{tpu_custom_call.1} parent=1 // pred_check_branch
      %1149 = sbr.rel (0) target = $region37
    $region36: #{tpu_custom_call.1} parent=1 // pred_region
      %1150 = dma.done [#allocation4], 16
    $region37: #{tpu_custom_call.1} parent=1 // pred_fallthru
      _
    %1151 = vsyncpa [#allocation3], 1
    %1152 = vsyncpa [#allocation4], 1

</llo_original>
